<compile_context>
chip_gen: v5e
topology: v5e:2x2
jax: 0.10.0
libtpu: 0.0.40
codegen_flags: <defaults>
</compile_context>

<pallas_src>
import functools

import jax
import jax.numpy as jnp
from jax.experimental import pallas as pl
from jax.experimental.pallas import tpu as pltpu


def _deepset_kernel(x_ref, w1_ref, b1_ref, w23_ref, b23_ref, w4_ref, b4_ref,
                    out_ref, *, use_bf16_mxu):
    tb, S, D = x_ref.shape

    def mxu(a):
        # bf16 MXU inputs (fast path on all generations); accumulation stays
        # f32 via preferred_element_type; elementwise bias/ReLU stays f32.
        return a.astype(jnp.bfloat16) if use_bf16_mxu else a

    # ---- phi layer 1 on the whole (tb*S, D) slab (one big MXU matmul) ----
    x = x_ref[...].reshape(tb * S, D)
    h = jnp.dot(mxu(x), w1_ref[...],
                preferred_element_type=jnp.float32) + b1_ref[...]
    h = jnp.maximum(h, 0.0)                                     # (tb*S, H) f32

    # ---- permutation-invariant pooling before the remaining (linear) layers ----
    hs = jnp.sum(h.reshape(tb, S, -1), axis=1)                  # (tb, H)

    # ---- fused phi-L2 + rho-L1:  relu( hs @ (W2@W3) + S*b2@W3 + b3 ) ----
    r = jnp.dot(mxu(hs), w23_ref[...],
                preferred_element_type=jnp.float32) + b23_ref[...]
    r = jnp.maximum(r, 0.0)                                     # (tb, RH) f32

    # ---- rho layer 2 (output feature dim padded to >=128 -> lane-dense) ----
    o = jnp.dot(mxu(r), w4_ref[...],
                preferred_element_type=jnp.float32) + b4_ref[...]

    out_ref[...] = o.astype(out_ref.dtype)


def deepset_invariant(x, w1, b1, w2, b2, w3, b3, w4, b4,
                      *, tb=None, use_bf16_mxu=False):
    """x: (B, S, D).  Weights stored as (in, out), biases as (1, out)."""
    B, S, D = x.shape
    H = w1.shape[1]
    RH = w3.shape[1]
    O = w4.shape[1]
    out_dtype = x.dtype

    # --- algebraic fusion of phi layer 2 and rho layer 1 (exact up to f32 rounding) ---
    #   (hs @ W2 + S*b2) @ W3 + b3 == hs @ (W2 @ W3) + (S*(b2 @ W3) + b3)
    w23 = jnp.dot(w2, w3)                       # (H, RH)
    b23 = float(S) * jnp.dot(b2, w3) + b3       # (1, RH)

    # --- pad the output feature dim so stores are full 128-lane (unmasked) vst ---
    O_pad = O if O >= 128 else 128
    if O_pad != O:
        w4 = jnp.pad(w4, ((0, 0), (0, O_pad - O)))
        b4 = jnp.pad(b4, ((0, 0), (0, O_pad - O)))

    in_elt = 2 if use_bf16_mxu else jnp.dtype(x.dtype).itemsize
    out_elt = jnp.dtype(out_dtype).itemsize

    # --- VMEM-budgeted batch tile: ~1024 MXU rows per grid step ---
    if tb is None:
        tb = max(1, 1024 // max(1, S))
        budget = 24 << 20                       # conservative: fits v7x scoped VMEM

        def step_bytes(t):
            x_tile = 2 * t * S * D * in_elt     # double-buffered x tile
            h_slab = t * S * H * 4              # f32 phi-L1 activation slab
            small = t * (H + RH + O_pad) * 4    # pooled / r / o slabs
            o_tile = 2 * t * O_pad * out_elt    # double-buffered output tile
            return x_tile + h_slab + small + o_tile

        while tb > 1 and step_bytes(tb) > budget:
            tb //= 2
    tb = max(1, min(tb, B))
    if tb != B and tb % 8 != 0:
        # keep the batch tile sublane-aligned unless it covers the whole batch
        tb = min(B, max(8, (tb // 8) * 8))

    # Pad the batch so it tiles evenly; padded rows are independent garbage
    # that gets sliced off below.
    B_pad = pl.cdiv(B, tb) * tb
    if B_pad != B:
        x = jnp.pad(x, ((0, B_pad - B), (0, 0), (0, 0)))
    G = B_pad // tb

    if use_bf16_mxu:
        # bf16 in HBM: halves the dominant x DMA stream and removes per-step
        # VPU cast work on the (tb*S, *) slabs.  Biases stay f32.
        x = x.astype(jnp.bfloat16)
        w1 = w1.astype(jnp.bfloat16)
        w23 = w23.astype(jnp.bfloat16)
        w4 = w4.astype(jnp.bfloat16)

    def full(a):
        n = a.ndim
        return pl.BlockSpec(a.shape, lambda b: (0,) * n)

    flops = (2 * B_pad * S * D * H + 2 * B_pad * H * RH + 2 * B_pad * RH * O_pad)
    bytes_accessed = (
        int(x.size) * jnp.dtype(x.dtype).itemsize
        + sum(int(a.size) * jnp.dtype(a.dtype).itemsize
              for a in (w1, b1, w23, b23, w4, b4))
        + B_pad * O_pad * out_elt)
    cost = pl.CostEstimate(flops=int(flops), transcendentals=0,
                           bytes_accessed=int(bytes_accessed))

    kernel = functools.partial(_deepset_kernel, use_bf16_mxu=use_bf16_mxu)

    out = pl.pallas_call(
        kernel,
        out_shape=jax.ShapeDtypeStruct((B_pad, O_pad), out_dtype),
        grid_spec=pltpu.PrefetchScalarGridSpec(
            num_scalar_prefetch=0,
            grid=(G,),
            in_specs=[
                pl.BlockSpec((tb, S, D), lambda b: (b, 0, 0)),   # x tile
                full(w1), full(b1),          # phi layer 1
                full(w23), full(b23),        # fused phi-L2 + rho-L1
                full(w4), full(b4),          # rho layer 2 (O padded to >=128)
            ],
            out_specs=pl.BlockSpec((tb, O_pad), lambda b: (b, 0)),
        ),
        compiler_params=pltpu.CompilerParams(
            dimension_semantics=("parallel",),
            vmem_limit_bytes=40 << 20,
        ),
        cost_estimate=cost,
    )(x, w1, b1, w23, b23, w4, b4)

    return out[:B, :O]


def _reference(x, w1, b1, w2, b2, w3, b3, w4, b4):
    h = jnp.maximum(jnp.einsum("bsd,dh->bsh", x, w1) + b1, 0.0)
    p = jnp.einsum("bsh,hp->bsp", h, w2) + b2
    s = jnp.sum(p, axis=1)                                      # sum over set dim
    r = jnp.maximum(s @ w3 + b3, 0.0)
    return r @ w4 + b4


if __name__ == "__main__":
    # x : [batch, set_size, feature] as in the PyTorch forward.
    B, S, D = 32, 8, 32     # auto tb -> 32 (whole batch in one big program)
    H, P = 32, 32           # phi hidden / output dims
    RH, O = 32, 16          # rho hidden / output dims

    key = jax.random.PRNGKey(0)
    kx, k1, k2, k3, k4 = jax.random.split(key, 5)

    x = jax.random.normal(kx, (B, S, D), dtype=jnp.float32)

    # Deterministic parameter init (stored as (in, out); biases as (1, out)).
    w1 = jax.random.normal(k1, (D, H), dtype=jnp.float32) * 0.1
    b1 = jnp.zeros((1, H), dtype=jnp.float32)
    w2 = jax.random.normal(k2, (H, P), dtype=jnp.float32) * 0.1
    b2 = jnp.full((1, P), 0.01, dtype=jnp.float32)
    w3 = jax.random.normal(k3, (P, RH), dtype=jnp.float32) * 0.1
    b3 = jnp.zeros((1, RH), dtype=jnp.float32)
    w4 = jax.random.normal(k4, (RH, O), dtype=jnp.float32) * 0.1
    b4 = jnp.full((1, O), 0.01, dtype=jnp.float32)

    params = (w1, b1, w2, b2, w3, b3, w4, b4)
    ref = _reference(x, *params)

    # --- f32 path, auto tile size (single big program) ---
    out = jax.block_until_ready(deepset_invariant(x, *params))
    assert out.shape == (B, O), out.shape
    assert jnp.allclose(out, ref, atol=1e-3, rtol=1e-3), (
        f"max abs err (f32) = {jnp.max(jnp.abs(out - ref))}")

    # --- multi-program grid path (explicit tb) exercises pipelined x DMAs ---
    out_g = jax.block_until_ready(deepset_invariant(x, *params, tb=8))
    assert out_g.shape == (B, O), out_g.shape
    assert jnp.allclose(out_g, ref, atol=1e-3, rtol=1e-3), (
        f"max abs err (grid) = {jnp.max(jnp.abs(out_g - ref))}")

    # --- ragged batch: exercises the pad-and-slice path ---
    Br = 5
    out_r = jax.block_until_ready(deepset_invariant(x[:Br], *params))
    assert out_r.shape == (Br, O), out_r.shape
    assert jnp.allclose(out_r, ref[:Br], atol=1e-3, rtol=1e-3), (
        f"max abs err (ragged) = {jnp.max(jnp.abs(out_r - ref[:Br]))}")

    # --- bf16-in-HBM MXU path (f32 accumulation, f32 bias/ReLU) ---
    out_bf16 = jax.block_until_ready(
        deepset_invariant(x, *params, use_bf16_mxu=True))
    assert out_bf16.shape == (B, O), out_bf16.shape
    assert jnp.allclose(out_bf16, ref, atol=1.5e-1, rtol=1.5e-1), (
        f"max abs err (bf16) = {jnp.max(jnp.abs(out_bf16 - ref))}")

    print("KERNEL_OK")
</pallas_src>

<mosaic_0001>
module attributes {stable_mosaic.version = 11 : i64} {
  func.func @_deepset_kernel(%arg0: i32, %arg1: memref<32x8x32xf32, #tpu.memory_space<vmem>>, %arg2: memref<32x32xf32, #tpu.memory_space<vmem>>, %arg3: memref<1x32xf32, #tpu.memory_space<vmem>>, %arg4: memref<32x32xf32, #tpu.memory_space<vmem>>, %arg5: memref<1x32xf32, #tpu.memory_space<vmem>>, %arg6: memref<32x128xf32, #tpu.memory_space<vmem>>, %arg7: memref<1x128xf32, #tpu.memory_space<vmem>>, %arg8: memref<32x128xf32, #tpu.memory_space<vmem>>) attributes {dimension_semantics = [#tpu.dimension_semantics<parallel>], iteration_bounds = array<i64: 1>, scalar_prefetch = 0 : i64, scratch_operands = 0 : i64, tpu.core_type = #tpu.core_type<tc>, window_params = [{transform_indices = @transform_0, window_bounds = array<i64: 32, 8, 32>}, {pipeline_mode = #tpu.pipeline_mode<synchronous>, transform_indices = @transform_1, window_bounds = array<i64: 32, 32>}, {pipeline_mode = #tpu.pipeline_mode<synchronous>, transform_indices = @transform_2, window_bounds = array<i64: 1, 32>}, {pipeline_mode = #tpu.pipeline_mode<synchronous>, transform_indices = @transform_3, window_bounds = array<i64: 32, 32>}, {pipeline_mode = #tpu.pipeline_mode<synchronous>, transform_indices = @transform_4, window_bounds = array<i64: 1, 32>}, {pipeline_mode = #tpu.pipeline_mode<synchronous>, transform_indices = @transform_5, window_bounds = array<i64: 32, 128>}, {pipeline_mode = #tpu.pipeline_mode<synchronous>, transform_indices = @transform_6, window_bounds = array<i64: 1, 128>}, {transform_indices = @transform_7, window_bounds = array<i64: 32, 128>}]} {
    %c0 = arith.constant 0 : index
    %c0_0 = arith.constant 0 : index
    %c0_1 = arith.constant 0 : index
    %0 = vector.load %arg1[%c0, %c0_0, %c0_1] : memref<32x8x32xf32, #tpu.memory_space<vmem>>, vector<32x8x32xf32>
    %1 = vector.shape_cast %0 : vector<32x8x32xf32> to vector<256x32xf32>
    %c0_2 = arith.constant 0 : index
    %c0_3 = arith.constant 0 : index
    %2 = vector.load %arg2[%c0_2, %c0_3] : memref<32x32xf32, #tpu.memory_space<vmem>>, vector<32x32xf32>
    %cst = arith.constant dense<0.000000e+00> : vector<256x32xf32>
    %3 = tpu.matmul %1, %2, %cst {dimension_numbers = #tpu.dot_dimension_numbers<[1], [0], [0], [1], [0, 0, 1, 1], [], []>} : vector<256x32xf32>, vector<32x32xf32>, vector<256x32xf32> -> vector<256x32xf32>
    %c0_4 = arith.constant 0 : index
    %c0_5 = arith.constant 0 : index
    %4 = vector.load %arg3[%c0_4, %c0_5] : memref<1x32xf32, #tpu.memory_space<vmem>>, vector<1x32xf32>
    %5 = vector.broadcast %4 : vector<1x32xf32> to vector<256x32xf32>
    %6 = arith.addf %3, %5 : vector<256x32xf32>
    %cst_6 = arith.constant 0.000000e+00 : f32
    %7 = vector.broadcast %cst_6 : f32 to vector<256x32xf32>
    %8 = arith.maximumf %6, %7 : vector<256x32xf32>
    %9 = vector.shape_cast %8 : vector<256x32xf32> to vector<32x8x32xf32>
    %cst_7 = arith.constant dense<0.000000e+00> : vector<32x32xf32>
    %10 = vector.multi_reduction <add>, %9, %cst_7 [1] : vector<32x8x32xf32> to vector<32x32xf32>
    %c0_8 = arith.constant 0 : index
    %c0_9 = arith.constant 0 : index
    %11 = vector.load %arg4[%c0_8, %c0_9] : memref<32x32xf32, #tpu.memory_space<vmem>>, vector<32x32xf32>
    %cst_10 = arith.constant dense<0.000000e+00> : vector<32x32xf32>
    %12 = tpu.matmul %10, %11, %cst_10 {dimension_numbers = #tpu.dot_dimension_numbers<[1], [0], [0], [1], [0, 0, 1, 1], [], []>} : vector<32x32xf32>, vector<32x32xf32>, vector<32x32xf32> -> vector<32x32xf32>
    %c0_11 = arith.constant 0 : index
    %c0_12 = arith.constant 0 : index
    %13 = vector.load %arg5[%c0_11, %c0_12] : memref<1x32xf32, #tpu.memory_space<vmem>>, vector<1x32xf32>
    %14 = vector.broadcast %13 : vector<1x32xf32> to vector<32x32xf32>
    %15 = arith.addf %12, %14 : vector<32x32xf32>
    %cst_13 = arith.constant 0.000000e+00 : f32
    %16 = vector.broadcast %cst_13 : f32 to vector<32x32xf32>
    %17 = arith.maximumf %15, %16 : vector<32x32xf32>
    %c0_14 = arith.constant 0 : index
    %c0_15 = arith.constant 0 : index
    %18 = vector.load %arg6[%c0_14, %c0_15] : memref<32x128xf32, #tpu.memory_space<vmem>>, vector<32x128xf32>
    %cst_16 = arith.constant dense<0.000000e+00> : vector<32x128xf32>
    %19 = tpu.matmul %17, %18, %cst_16 {dimension_numbers = #tpu.dot_dimension_numbers<[1], [0], [0], [1], [0, 0, 1, 1], [], []>} : vector<32x32xf32>, vector<32x128xf32>, vector<32x128xf32> -> vector<32x128xf32>
    %c0_17 = arith.constant 0 : index
    %c0_18 = arith.constant 0 : index
    %20 = vector.load %arg7[%c0_17, %c0_18] : memref<1x128xf32, #tpu.memory_space<vmem>>, vector<1x128xf32>
    %21 = vector.broadcast %20 : vector<1x128xf32> to vector<32x128xf32>
    %22 = arith.addf %19, %21 : vector<32x128xf32>
    %c0_19 = arith.constant 0 : index
    %c0_20 = arith.constant 0 : index
    %23 = vector.load %arg8[%c0_19, %c0_20] : memref<32x128xf32, #tpu.memory_space<vmem>>, vector<32x128xf32>
    tpu.vector_store %arg8[%c0_19, %c0_20], %22 {strides = array<i32>} : memref<32x128xf32, #tpu.memory_space<vmem>>, vector<32x128xf32>,
    return
  }
  func.func @transform_0(%arg0: i32) -> (i32, i32, i32) {
    %c0_i32 = arith.constant 0 : i32
    %c0_i32_0 = arith.constant 0 : i32
    %c0_i32_1 = arith.constant 0 : i32
    return %arg0, %c0_i32, %c0_i32_0 : i32, i32, i32
  }
  func.func @transform_1(%arg0: i32) -> (i32, i32) {
    %c0_i32 = arith.constant 0 : i32
    %c0_i32_0 = arith.constant 0 : i32
    %c0_i32_1 = arith.constant 0 : i32
    return %c0_i32, %c0_i32_0 : i32, i32
  }
  func.func @transform_2(%arg0: i32) -> (i32, i32) {
    %c0_i32 = arith.constant 0 : i32
    %c0_i32_0 = arith.constant 0 : i32
    %c0_i32_1 = arith.constant 0 : i32
    return %c0_i32, %c0_i32_0 : i32, i32
  }
  func.func @transform_3(%arg0: i32) -> (i32, i32) {
    %c0_i32 = arith.constant 0 : i32
    %c0_i32_0 = arith.constant 0 : i32
    %c0_i32_1 = arith.constant 0 : i32
    return %c0_i32, %c0_i32_0 : i32, i32
  }
  func.func @transform_4(%arg0: i32) -> (i32, i32) {
    %c0_i32 = arith.constant 0 : i32
    %c0_i32_0 = arith.constant 0 : i32
    %c0_i32_1 = arith.constant 0 : i32
    return %c0_i32, %c0_i32_0 : i32, i32
  }
  func.func @transform_5(%arg0: i32) -> (i32, i32) {
    %c0_i32 = arith.constant 0 : i32
    %c0_i32_0 = arith.constant 0 : i32
    %c0_i32_1 = arith.constant 0 : i32
    return %c0_i32, %c0_i32_0 : i32, i32
  }
  func.func @transform_6(%arg0: i32) -> (i32, i32) {
    %c0_i32 = arith.constant 0 : i32
    %c0_i32_0 = arith.constant 0 : i32
    %c0_i32_1 = arith.constant 0 : i32
    return %c0_i32, %c0_i32_0 : i32, i32
  }
  func.func @transform_7(%arg0: i32) -> (i32, i32) {
    %c0_i32 = arith.constant 0 : i32
    %c0_i32_0 = arith.constant 0 : i32
    return %arg0, %c0_i32 : i32, i32
  }
}

</mosaic_0001>

<llo_original>
// kernel: tpu_custom_call.1
$region0: #{tpu_custom_call.1}
  #allocation0 [shape = 'u32[]', space=smem, size = 0x4, offset = 0x4, fixed_abs, tag = 'smem constant byte address 0x4 - core index']
  #allocation1 [shape = 'u32[72,128]{1,0:T(1,128)}', space=vmem, size = 0x9000, scoped, tag = 'internal scratch']
  %s0 = inlined_call_operand.hbm [shape: f32[32,8,32], index: 0, kind: input, shape index: {}]
  %s1 = inlined_call_operand.hbm [shape: f32[32,32], index: 1, kind: input, shape index: {}]
  %s2 = inlined_call_operand.vmem [shape: f32[1,32], index: 2, kind: input, shape index: {}]
  %s3 = inlined_call_operand.hbm [shape: f32[32,32], index: 3, kind: input, shape index: {}]
  %s4 = inlined_call_operand.vmem [shape: f32[1,32], index: 4, kind: input, shape index: {}]
  %s5 = inlined_call_operand.hbm [shape: f32[32,128], index: 5, kind: input, shape index: {}]
  %s6 = inlined_call_operand.vmem [shape: f32[1,128], index: 6, kind: input, shape index: {}]
  %s7 = inlined_call_operand.hbm [shape: f32[32,128], index: 7, kind: output, shape index: {}]
  %s8 = sld [smem:[#allocation0]]
  $region54: #{tpu_custom_call.1} parent=0
    _
  %s10 = ssub.s32 1, %s8
  %s11 = scalar_select 0, %s10, %s8
  $region1: #{tpu_custom_call.1} parent=0
    #allocation2 [shape = 'u8[131072]{0}', space=vmem, size = 0x20000, scoped, tag = 'input window, operand 0, single buffered']
    #allocation3 [shape = 's32[1]{0}', space=sflag, size = 0x4, scoped, tag = 'scoped memory for tpu_custom_call.1']
    #allocation4 [shape = 's32[1]{0}', space=sflag, size = 0x4, scoped, tag = 'scoped memory for tpu_custom_call.1']
    #allocation5 [shape = 'u8[16384]{0}', space=vmem, size = 0x4000, scoped, tag = 'input window, operand 1, single buffered']
    #allocation6 [shape = 's32[1]{0}', space=sflag, size = 0x4, scoped, tag = 'scoped memory for tpu_custom_call.1']
    #allocation7 [shape = 'u8[16384]{0}', space=vmem, size = 0x4000, scoped, tag = 'input window, operand 3, single buffered']
    #allocation8 [shape = 'u8[16384]{0}', space=vmem, size = 0x4000, scoped, tag = 'input window, operand 5, single buffered']
    #allocation9 [shape = 's32[1]{0}', space=sflag, size = 0x4, scoped, tag = 'scoped memory for tpu_custom_call.1']
    #allocation10 [shape = 'u8[16384]{0}', space=vmem, size = 0x4000, scoped, tag = 'output window, operand 0, single buffered']
    %12 = vsyncpa [#allocation3], 0
    %13 = vsyncpa [#allocation6], 0
    %14 = vsyncpa [#allocation9], 0
    %15 = vsyncpa [#allocation4], 0
    // Predicated region
    $region2: #{tpu_custom_call.1} parent=1 // pred_check
      _
    $region3: #{tpu_custom_call.1} parent=1 // pred_check_branch
      %17 = sbr.rel (0) target = $region5
    $region4: #{tpu_custom_call.1} parent=1 // pred_region
      %19 = vsyncadd [#allocation3], 0
      %s20 = sshll.u32 %s0, 4
      %s21 = int_to_ptr.hbm [resolvable:$true] %s20
      %s22 = sshll.u32 [#allocation2], 4
      %s23 = int_to_ptr.vmem [resolvable:$true] %s22
      %28 = dma.hbm_to_vmem [thread:$0]  %s21, 4096, %s23, [#allocation3], 128, 128, 8
    $region5: #{tpu_custom_call.1} parent=1 // pred_fallthru
      _
    // Predicated region
    $region6: #{tpu_custom_call.1} parent=1 // pred_check
      _
    $region7: #{tpu_custom_call.1} parent=1 // pred_check_branch
      %30 = sbr.rel (0) target = $region9
    $region8: #{tpu_custom_call.1} parent=1 // pred_region
      %32 = vsyncadd [#allocation6], 0
      %s33 = sshll.u32 %s1, 4
      %s34 = int_to_ptr.hbm [resolvable:$true] %s33
      %s35 = sshll.u32 [#allocation5], 4
      %s36 = int_to_ptr.vmem [resolvable:$true] %s35
      %41 = dma.hbm_to_vmem [thread:$0]  %s34, 512, %s36, [#allocation6], 128, 128, 8
    $region9: #{tpu_custom_call.1} parent=1 // pred_fallthru
      _
    // Predicated region
    $region10: #{tpu_custom_call.1} parent=1 // pred_check
      _
    $region11: #{tpu_custom_call.1} parent=1 // pred_check_branch
      %43 = sbr.rel (0) target = $region13
    $region12: #{tpu_custom_call.1} parent=1 // pred_region
      _
    $region13: #{tpu_custom_call.1} parent=1 // pred_fallthru
      _
    // Predicated region
    $region14: #{tpu_custom_call.1} parent=1 // pred_check
      _
    $region15: #{tpu_custom_call.1} parent=1 // pred_check_branch
      %45 = sbr.rel (0) target = $region17
    $region16: #{tpu_custom_call.1} parent=1 // pred_region
      %47 = vsyncadd [#allocation6], 0
      %s48 = sshll.u32 %s3, 4
      %s49 = int_to_ptr.hbm [resolvable:$true] %s48
      %s50 = sshll.u32 [#allocation7], 4
      %s51 = int_to_ptr.vmem [resolvable:$true] %s50
      %56 = dma.hbm_to_vmem [thread:$0]  %s49, 512, %s51, [#allocation6], 128, 128, 8
    $region17: #{tpu_custom_call.1} parent=1 // pred_fallthru
      _
    // Predicated region
    $region18: #{tpu_custom_call.1} parent=1 // pred_check
      _
    $region19: #{tpu_custom_call.1} parent=1 // pred_check_branch
      %58 = sbr.rel (0) target = $region21
    $region20: #{tpu_custom_call.1} parent=1 // pred_region
      _
    $region21: #{tpu_custom_call.1} parent=1 // pred_fallthru
      _
    // Predicated region
    $region22: #{tpu_custom_call.1} parent=1 // pred_check
      _
    $region23: #{tpu_custom_call.1} parent=1 // pred_check_branch
      %60 = sbr.rel (0) target = $region25
    $region24: #{tpu_custom_call.1} parent=1 // pred_region
      %62 = vsyncadd [#allocation9], 0
      %s63 = sshll.u32 %s5, 4
      %s64 = int_to_ptr.hbm [resolvable:$true] %s63
      %s65 = sshll.u32 [#allocation8], 4
      %s66 = int_to_ptr.vmem [resolvable:$true] %s65
      %71 = dma.hbm_to_vmem [thread:$0]  %s64, 512, %s66, [#allocation9], 128, 128, 8
    $region25: #{tpu_custom_call.1} parent=1 // pred_fallthru
      _
    // Predicated region
    $region26: #{tpu_custom_call.1} parent=1 // pred_check
      _
    $region27: #{tpu_custom_call.1} parent=1 // pred_check_branch
      %73 = sbr.rel (0) target = $region29
    $region28: #{tpu_custom_call.1} parent=1 // pred_region
      _
    $region29: #{tpu_custom_call.1} parent=1 // pred_fallthru
      _
    // Predicated region
    $region30: #{tpu_custom_call.1} parent=1 // pred_check
      _
    $region31: #{tpu_custom_call.1} parent=1 // pred_check_branch
      %75 = sbr.rel (0) target = $region33
    $region32: #{tpu_custom_call.1} parent=1 // pred_region
      %77 = dma.done [#allocation3], 4096
    $region33: #{tpu_custom_call.1} parent=1 // pred_fallthru
      _
    // Predicated region
    $region34: #{tpu_custom_call.1} parent=1 // pred_check
      _
    $region35: #{tpu_custom_call.1} parent=1 // pred_check_branch
      %79 = sbr.rel (0) target = $region37
    $region36: #{tpu_custom_call.1} parent=1 // pred_region
      %81 = dma.done [#allocation6], 512
    $region37: #{tpu_custom_call.1} parent=1 // pred_fallthru
      _
    // Predicated region
    $region38: #{tpu_custom_call.1} parent=1 // pred_check
      _
    $region39: #{tpu_custom_call.1} parent=1 // pred_check_branch
      %83 = sbr.rel (0) target = $region41
    $region40: #{tpu_custom_call.1} parent=1 // pred_region
      %85 = dma.done [#allocation6], 512
    $region41: #{tpu_custom_call.1} parent=1 // pred_fallthru
      _
    // Predicated region
    $region42: #{tpu_custom_call.1} parent=1 // pred_check
      _
    $region43: #{tpu_custom_call.1} parent=1 // pred_check_branch
      %87 = sbr.rel (0) target = $region45
    $region44: #{tpu_custom_call.1} parent=1 // pred_region
      %89 = dma.done [#allocation9], 512
    $region45: #{tpu_custom_call.1} parent=1 // pred_fallthru
      _
    %v90 = vld [vmem:[#allocation2] sm:$0xff]
    %v91 = vld [vmem:[#allocation2 + $0x8] sm:$0xff]
    %v92 = vld [vmem:[#allocation2 + $0x10] sm:$0xff]
    %v93 = vld [vmem:[#allocation2 + $0x18] sm:$0xff]
    %v94 = vld [vmem:[#allocation2 + $0x20] sm:$0xff]
    %v95 = vld [vmem:[#allocation2 + $0x28] sm:$0xff]
    %v96 = vld [vmem:[#allocation2 + $0x30] sm:$0xff]
    %v97 = vld [vmem:[#allocation2 + $0x38] sm:$0xff]
    %v98 = vld [vmem:[#allocation2 + $0x40] sm:$0xff]
    %v99 = vld [vmem:[#allocation2 + $0x48] sm:$0xff]
    %v100 = vld [vmem:[#allocation2 + $0x50] sm:$0xff]
    %v101 = vld [vmem:[#allocation2 + $0x58] sm:$0xff]
    %v102 = vld [vmem:[#allocation2 + $0x60] sm:$0xff]
    %v103 = vld [vmem:[#allocation2 + $0x68] sm:$0xff]
    %v104 = vld [vmem:[#allocation2 + $0x70] sm:$0xff]
    %v105 = vld [vmem:[#allocation2 + $0x78] sm:$0xff]
    %v106 = vld [vmem:[#allocation2 + $0x80] sm:$0xff]
    %v107 = vld [vmem:[#allocation2 + $0x88] sm:$0xff]
    %v108 = vld [vmem:[#allocation2 + $0x90] sm:$0xff]
    %v109 = vld [vmem:[#allocation2 + $0x98] sm:$0xff]
    %v110 = vld [vmem:[#allocation2 + $0xa0] sm:$0xff]
    %v111 = vld [vmem:[#allocation2 + $0xa8] sm:$0xff]
    %v112 = vld [vmem:[#allocation2 + $0xb0] sm:$0xff]
    %v113 = vld [vmem:[#allocation2 + $0xb8] sm:$0xff]
    %v114 = vld [vmem:[#allocation2 + $0xc0] sm:$0xff]
    %v115 = vld [vmem:[#allocation2 + $0xc8] sm:$0xff]
    %v116 = vld [vmem:[#allocation2 + $0xd0] sm:$0xff]
    %v117 = vld [vmem:[#allocation2 + $0xd8] sm:$0xff]
    %v118 = vld [vmem:[#allocation2 + $0xe0] sm:$0xff]
    %v119 = vld [vmem:[#allocation2 + $0xe8] sm:$0xff]
    %v120 = vld [vmem:[#allocation2 + $0xf0] sm:$0xff]
    %v121 = vld [vmem:[#allocation2 + $0xf8] sm:$0xff]
    %v122 = vld [vmem:[#allocation5] sm:$0xff]
    %v123 = vld [vmem:[#allocation5 + $0x8] sm:$0xff]
    %v124 = vld [vmem:[#allocation5 + $0x10] sm:$0xff]
    %v125 = vld [vmem:[#allocation5 + $0x18] sm:$0xff]
    %v126 = vld [vmem:[%s2] sm:$0x1]
    %v128 = vperm.slane %v126, 0
    %vm130 = vcmask 261120
    %v132 = vsel %vm130, %v90, 0
    %v135 = vsel %vm130, %v91, 0
    %v138 = vsel %vm130, %v92, 0
    %v141 = vsel %vm130, %v93, 0
    %v144 = vsel %vm130, %v94, 0
    %v147 = vsel %vm130, %v95, 0
    %v150 = vsel %vm130, %v96, 0
    %v153 = vsel %vm130, %v97, 0
    %v156 = vsel %vm130, %v98, 0
    %v159 = vsel %vm130, %v99, 0
    %v162 = vsel %vm130, %v100, 0
    %v165 = vsel %vm130, %v101, 0
    %v168 = vsel %vm130, %v102, 0
    %v171 = vsel %vm130, %v103, 0
    %v174 = vsel %vm130, %v104, 0
    %v177 = vsel %vm130, %v105, 0
    %v180 = vsel %vm130, %v106, 0
    %v183 = vsel %vm130, %v107, 0
    %v186 = vsel %vm130, %v108, 0
    %v189 = vsel %vm130, %v109, 0
    %v192 = vsel %vm130, %v110, 0
    %v195 = vsel %vm130, %v111, 0
    %v198 = vsel %vm130, %v112, 0
    %v201 = vsel %vm130, %v113, 0
    %v204 = vsel %vm130, %v114, 0
    %v207 = vsel %vm130, %v115, 0
    %v210 = vsel %vm130, %v116, 0
    %v213 = vsel %vm130, %v117, 0
    %v216 = vsel %vm130, %v118, 0
    %v219 = vsel %vm130, %v119, 0
    %v222 = vsel %vm130, %v120, 0
    %v225 = vsel %vm130, %v121, 0
    %227 = vmatpush.msra.mxu0 0.0
    %228 = vmatpush.msra.mxu0 0.0
    %229 = vmatpush.msra.mxu0 0.0
    %230 = vmatpush.msra.mxu0 0.0
    %231 = vmatpush.msra.mxu0 0.0
    %232 = vmatpush.msra.mxu0 0.0
    %233 = vmatpush.msra.mxu0 0.0
    %234 = vmatpush.msra.mxu0 0.0
    %235 = vmatpush.msra.mxu0 0.0
    %236 = vmatpush.msra.mxu0 0.0
    %237 = vmatpush.msra.mxu0 0.0
    %238 = vmatpush.msra.mxu0 0.0
    %239 = vmatpush.msra.mxu0 %v125
    %240 = vmatpush.msra.mxu0 %v124
    %241 = vmatpush.msra.mxu0 %v123
    %242 = vmatpush.msra.mxu0 %v122
    %243 = vmatmul.f32.gmra.mxu0 %v132
    %v244 = vpop.f32.mrf.mxu0
    %v245 = vadd.f32 %v128, %v244
    %246 = vmatmul.f32.gmra.mxu0 %v135
    %v247 = vpop.f32.mrf.mxu0
    %v248 = vadd.f32 %v128, %v247
    %249 = vmatmul.f32.gmra.mxu0 %v138
    %v250 = vpop.f32.mrf.mxu0
    %v251 = vadd.f32 %v128, %v250
    %252 = vmatmul.f32.gmra.mxu0 %v141
    %v253 = vpop.f32.mrf.mxu0
    %v254 = vadd.f32 %v128, %v253
    %255 = vmatmul.f32.gmra.mxu0 %v144
    %v256 = vpop.f32.mrf.mxu0
    %v257 = vadd.f32 %v128, %v256
    %258 = vmatmul.f32.gmra.mxu0 %v147
    %v259 = vpop.f32.mrf.mxu0
    %v260 = vadd.f32 %v128, %v259
    %261 = vmatmul.f32.gmra.mxu0 %v150
    %v262 = vpop.f32.mrf.mxu0
    %v263 = vadd.f32 %v128, %v262
    %264 = vmatmul.f32.gmra.mxu0 %v153
    %v265 = vpop.f32.mrf.mxu0
    %v266 = vadd.f32 %v128, %v265
    %267 = vmatmul.f32.gmra.mxu0 %v156
    %v268 = vpop.f32.mrf.mxu0
    %v269 = vadd.f32 %v128, %v268
    %270 = vmatmul.f32.gmra.mxu0 %v159
    %v271 = vpop.f32.mrf.mxu0
    %v272 = vadd.f32 %v128, %v271
    %273 = vmatmul.f32.gmra.mxu0 %v162
    %v274 = vpop.f32.mrf.mxu0
    %v275 = vadd.f32 %v128, %v274
    %276 = vmatmul.f32.gmra.mxu0 %v165
    %v277 = vpop.f32.mrf.mxu0
    %v278 = vadd.f32 %v128, %v277
    %279 = vmatmul.f32.gmra.mxu0 %v168
    %v280 = vpop.f32.mrf.mxu0
    %v281 = vadd.f32 %v128, %v280
    %282 = vmatmul.f32.gmra.mxu0 %v171
    %v283 = vpop.f32.mrf.mxu0
    %v284 = vadd.f32 %v128, %v283
    %285 = vmatmul.f32.gmra.mxu0 %v174
    %v286 = vpop.f32.mrf.mxu0
    %v287 = vadd.f32 %v128, %v286
    %288 = vmatmul.f32.gmra.mxu0 %v177
    %v289 = vpop.f32.mrf.mxu0
    %v290 = vadd.f32 %v128, %v289
    %291 = vmatmul.f32.gmra.mxu0 %v180
    %v292 = vpop.f32.mrf.mxu0
    %v293 = vadd.f32 %v128, %v292
    %294 = vmatmul.f32.gmra.mxu0 %v183
    %v295 = vpop.f32.mrf.mxu0
    %v296 = vadd.f32 %v128, %v295
    %297 = vmatmul.f32.gmra.mxu0 %v186
    %v298 = vpop.f32.mrf.mxu0
    %v299 = vadd.f32 %v128, %v298
    %300 = vmatmul.f32.gmra.mxu0 %v189
    %v301 = vpop.f32.mrf.mxu0
    %v302 = vadd.f32 %v128, %v301
    %303 = vmatmul.f32.gmra.mxu0 %v192
    %v304 = vpop.f32.mrf.mxu0
    %v305 = vadd.f32 %v128, %v304
    %306 = vmatmul.f32.gmra.mxu0 %v195
    %v307 = vpop.f32.mrf.mxu0
    %v308 = vadd.f32 %v128, %v307
    %309 = vmatmul.f32.gmra.mxu0 %v198
    %v310 = vpop.f32.mrf.mxu0
    %v311 = vadd.f32 %v128, %v310
    %312 = vmatmul.f32.gmra.mxu0 %v201
    %v313 = vpop.f32.mrf.mxu0
    %v314 = vadd.f32 %v128, %v313
    %315 = vmatmul.f32.gmra.mxu0 %v204
    %v316 = vpop.f32.mrf.mxu0
    %v317 = vadd.f32 %v128, %v316
    %318 = vmatmul.f32.gmra.mxu0 %v207
    %v319 = vpop.f32.mrf.mxu0
    %v320 = vadd.f32 %v128, %v319
    %321 = vmatmul.f32.gmra.mxu0 %v210
    %v322 = vpop.f32.mrf.mxu0
    %v323 = vadd.f32 %v128, %v322
    %324 = vmatmul.f32.gmra.mxu0 %v213
    %v325 = vpop.f32.mrf.mxu0
    %v326 = vadd.f32 %v128, %v325
    %327 = vmatmul.f32.gmra.mxu0 %v216
    %v328 = vpop.f32.mrf.mxu0
    %v329 = vadd.f32 %v128, %v328
    %330 = vmatmul.f32.gmra.mxu0 %v219
    %v331 = vpop.f32.mrf.mxu0
    %v332 = vadd.f32 %v128, %v331
    %333 = vmatmul.f32.gmra.mxu0 %v222
    %v334 = vpop.f32.mrf.mxu0
    %v335 = vadd.f32 %v128, %v334
    %336 = vmatmul.f32.gmra.mxu0 %v225
    %v337 = vpop.f32.mrf.mxu0
    %v338 = vadd.f32 %v128, %v337
    %339 = vdwg.mxu0
    %v340 = vmax.f32 %v245, 0.0
    %v341 = vmax.f32 %v248, 0.0
    %v342 = vmax.f32 %v251, 0.0
    %v343 = vmax.f32 %v254, 0.0
    %v344 = vmax.f32 %v257, 0.0
    %v345 = vmax.f32 %v260, 0.0
    %v346 = vmax.f32 %v263, 0.0
    %v347 = vmax.f32 %v266, 0.0
    %v348 = vmax.f32 %v269, 0.0
    %v349 = vmax.f32 %v272, 0.0
    %v350 = vmax.f32 %v275, 0.0
    %v351 = vmax.f32 %v278, 0.0
    %v352 = vmax.f32 %v281, 0.0
    %v353 = vmax.f32 %v284, 0.0
    %v354 = vmax.f32 %v287, 0.0
    %v355 = vmax.f32 %v290, 0.0
    %v356 = vmax.f32 %v293, 0.0
    %v357 = vmax.f32 %v296, 0.0
    %v358 = vmax.f32 %v299, 0.0
    %v359 = vmax.f32 %v302, 0.0
    %v360 = vmax.f32 %v305, 0.0
    %v361 = vmax.f32 %v308, 0.0
    %v362 = vmax.f32 %v311, 0.0
    %v363 = vmax.f32 %v314, 0.0
    %v364 = vmax.f32 %v317, 0.0
    %v365 = vmax.f32 %v320, 0.0
    %v366 = vmax.f32 %v323, 0.0
    %v367 = vmax.f32 %v326, 0.0
    %v368 = vmax.f32 %v329, 0.0
    %v369 = vmax.f32 %v332, 0.0
    %v370 = vmax.f32 %v335, 0.0
    %v371 = vmax.f32 %v338, 0.0
    %v372 = vsel %vm130, %v340, 0.0
    %v373 = vrot.slane %v372, 4
    %v374 = vadd.f32 %v372, %v373
    %v375 = vrot.slane %v374, 2
    %v376 = vadd.f32 %v374, %v375
    %v377 = vrot.slane %v376, 1
    %v378 = vadd.f32 %v376, %v377
    %v379 = vsel %vm130, %v341, 0.0
    %v380 = vrot.slane %v379, 4
    %v381 = vadd.f32 %v379, %v380
    %v382 = vrot.slane %v381, 2
    %v383 = vadd.f32 %v381, %v382
    %v384 = vrot.slane %v383, 1
    %v385 = vadd.f32 %v383, %v384
    %v386 = vsel %vm130, %v342, 0.0
    %v387 = vrot.slane %v386, 4
    %v388 = vadd.f32 %v386, %v387
    %v389 = vrot.slane %v388, 2
    %v390 = vadd.f32 %v388, %v389
    %v391 = vrot.slane %v390, 1
    %v392 = vadd.f32 %v390, %v391
    %v393 = vsel %vm130, %v343, 0.0
    %v394 = vrot.slane %v393, 4
    %v395 = vadd.f32 %v393, %v394
    %v396 = vrot.slane %v395, 2
    %v397 = vadd.f32 %v395, %v396
    %v398 = vrot.slane %v397, 1
    %v399 = vadd.f32 %v397, %v398
    %v400 = vsel %vm130, %v344, 0.0
    %v401 = vrot.slane %v400, 4
    %v402 = vadd.f32 %v400, %v401
    %v403 = vrot.slane %v402, 2
    %v404 = vadd.f32 %v402, %v403
    %v405 = vrot.slane %v404, 1
    %v406 = vadd.f32 %v404, %v405
    %v407 = vsel %vm130, %v345, 0.0
    %v408 = vrot.slane %v407, 4
    %v409 = vadd.f32 %v407, %v408
    %v410 = vrot.slane %v409, 2
    %v411 = vadd.f32 %v409, %v410
    %v412 = vrot.slane %v411, 1
    %v413 = vadd.f32 %v411, %v412
    %v414 = vsel %vm130, %v346, 0.0
    %v415 = vrot.slane %v414, 4
    %v416 = vadd.f32 %v414, %v415
    %v417 = vrot.slane %v416, 2
    %v418 = vadd.f32 %v416, %v417
    %v419 = vrot.slane %v418, 1
    %v420 = vadd.f32 %v418, %v419
    %v421 = vsel %vm130, %v347, 0.0
    %v422 = vrot.slane %v421, 4
    %v423 = vadd.f32 %v421, %v422
    %v424 = vrot.slane %v423, 2
    %v425 = vadd.f32 %v423, %v424
    %v426 = vrot.slane %v425, 1
    %v427 = vadd.f32 %v425, %v426
    %v428 = vsel %vm130, %v348, 0.0
    %v429 = vrot.slane %v428, 4
    %v430 = vadd.f32 %v428, %v429
    %v431 = vrot.slane %v430, 2
    %v432 = vadd.f32 %v430, %v431
    %v433 = vrot.slane %v432, 1
    %v434 = vadd.f32 %v432, %v433
    %v435 = vsel %vm130, %v349, 0.0
    %v436 = vrot.slane %v435, 4
    %v437 = vadd.f32 %v435, %v436
    %v438 = vrot.slane %v437, 2
    %v439 = vadd.f32 %v437, %v438
    %v440 = vrot.slane %v439, 1
    %v441 = vadd.f32 %v439, %v440
    %v442 = vsel %vm130, %v350, 0.0
    %v443 = vrot.slane %v442, 4
    %v444 = vadd.f32 %v442, %v443
    %v445 = vrot.slane %v444, 2
    %v446 = vadd.f32 %v444, %v445
    %v447 = vrot.slane %v446, 1
    %v448 = vadd.f32 %v446, %v447
    %v449 = vsel %vm130, %v351, 0.0
    %v450 = vrot.slane %v449, 4
    %v451 = vadd.f32 %v449, %v450
    %v452 = vrot.slane %v451, 2
    %v453 = vadd.f32 %v451, %v452
    %v454 = vrot.slane %v453, 1
    %v455 = vadd.f32 %v453, %v454
    %v456 = vsel %vm130, %v352, 0.0
    %v457 = vrot.slane %v456, 4
    %v458 = vadd.f32 %v456, %v457
    %v459 = vrot.slane %v458, 2
    %v460 = vadd.f32 %v458, %v459
    %v461 = vrot.slane %v460, 1
    %v462 = vadd.f32 %v460, %v461
    %v463 = vsel %vm130, %v353, 0.0
    %v464 = vrot.slane %v463, 4
    %v465 = vadd.f32 %v463, %v464
    %v466 = vrot.slane %v465, 2
    %v467 = vadd.f32 %v465, %v466
    %v468 = vrot.slane %v467, 1
    %v469 = vadd.f32 %v467, %v468
    %v470 = vsel %vm130, %v354, 0.0
    %v471 = vrot.slane %v470, 4
    %v472 = vadd.f32 %v470, %v471
    %v473 = vrot.slane %v472, 2
    %v474 = vadd.f32 %v472, %v473
    %v475 = vrot.slane %v474, 1
    %v476 = vadd.f32 %v474, %v475
    %v477 = vsel %vm130, %v355, 0.0
    %v478 = vrot.slane %v477, 4
    %v479 = vadd.f32 %v477, %v478
    %v480 = vrot.slane %v479, 2
    %v481 = vadd.f32 %v479, %v480
    %v482 = vrot.slane %v481, 1
    %v483 = vadd.f32 %v481, %v482
    %v484 = vsel %vm130, %v356, 0.0
    %v485 = vrot.slane %v484, 4
    %v486 = vadd.f32 %v484, %v485
    %v487 = vrot.slane %v486, 2
    %v488 = vadd.f32 %v486, %v487
    %v489 = vrot.slane %v488, 1
    %v490 = vadd.f32 %v488, %v489
    %v491 = vsel %vm130, %v357, 0.0
    %v492 = vrot.slane %v491, 4
    %v493 = vadd.f32 %v491, %v492
    %v494 = vrot.slane %v493, 2
    %v495 = vadd.f32 %v493, %v494
    %v496 = vrot.slane %v495, 1
    %v497 = vadd.f32 %v495, %v496
    %v498 = vsel %vm130, %v358, 0.0
    %v499 = vrot.slane %v498, 4
    %v500 = vadd.f32 %v498, %v499
    %v501 = vrot.slane %v500, 2
    %v502 = vadd.f32 %v500, %v501
    %v503 = vrot.slane %v502, 1
    %v504 = vadd.f32 %v502, %v503
    %v505 = vsel %vm130, %v359, 0.0
    %v506 = vrot.slane %v505, 4
    %v507 = vadd.f32 %v505, %v506
    %v508 = vrot.slane %v507, 2
    %v509 = vadd.f32 %v507, %v508
    %v510 = vrot.slane %v509, 1
    %v511 = vadd.f32 %v509, %v510
    %v512 = vsel %vm130, %v360, 0.0
    %v513 = vrot.slane %v512, 4
    %v514 = vadd.f32 %v512, %v513
    %v515 = vrot.slane %v514, 2
    %v516 = vadd.f32 %v514, %v515
    %v517 = vrot.slane %v516, 1
    %v518 = vadd.f32 %v516, %v517
    %v519 = vsel %vm130, %v361, 0.0
    %v520 = vrot.slane %v519, 4
    %v521 = vadd.f32 %v519, %v520
    %v522 = vrot.slane %v521, 2
    %v523 = vadd.f32 %v521, %v522
    %v524 = vrot.slane %v523, 1
    %v525 = vadd.f32 %v523, %v524
    %v526 = vsel %vm130, %v362, 0.0
    %v527 = vrot.slane %v526, 4
    %v528 = vadd.f32 %v526, %v527
    %v529 = vrot.slane %v528, 2
    %v530 = vadd.f32 %v528, %v529
    %v531 = vrot.slane %v530, 1
    %v532 = vadd.f32 %v530, %v531
    %v533 = vsel %vm130, %v363, 0.0
    %v534 = vrot.slane %v533, 4
    %v535 = vadd.f32 %v533, %v534
    %v536 = vrot.slane %v535, 2
    %v537 = vadd.f32 %v535, %v536
    %v538 = vrot.slane %v537, 1
    %v539 = vadd.f32 %v537, %v538
    %v540 = vsel %vm130, %v364, 0.0
    %v541 = vrot.slane %v540, 4
    %v542 = vadd.f32 %v540, %v541
    %v543 = vrot.slane %v542, 2
    %v544 = vadd.f32 %v542, %v543
    %v545 = vrot.slane %v544, 1
    %v546 = vadd.f32 %v544, %v545
    %v547 = vsel %vm130, %v365, 0.0
    %v548 = vrot.slane %v547, 4
    %v549 = vadd.f32 %v547, %v548
    %v550 = vrot.slane %v549, 2
    %v551 = vadd.f32 %v549, %v550
    %v552 = vrot.slane %v551, 1
    %v553 = vadd.f32 %v551, %v552
    %v554 = vsel %vm130, %v366, 0.0
    %v555 = vrot.slane %v554, 4
    %v556 = vadd.f32 %v554, %v555
    %v557 = vrot.slane %v556, 2
    %v558 = vadd.f32 %v556, %v557
    %v559 = vrot.slane %v558, 1
    %v560 = vadd.f32 %v558, %v559
    %v561 = vsel %vm130, %v367, 0.0
    %v562 = vrot.slane %v561, 4
    %v563 = vadd.f32 %v561, %v562
    %v564 = vrot.slane %v563, 2
    %v565 = vadd.f32 %v563, %v564
    %v566 = vrot.slane %v565, 1
    %v567 = vadd.f32 %v565, %v566
    %v568 = vsel %vm130, %v368, 0.0
    %v569 = vrot.slane %v568, 4
    %v570 = vadd.f32 %v568, %v569
    %v571 = vrot.slane %v570, 2
    %v572 = vadd.f32 %v570, %v571
    %v573 = vrot.slane %v572, 1
    %v574 = vadd.f32 %v572, %v573
    %v575 = vsel %vm130, %v369, 0.0
    %v576 = vrot.slane %v575, 4
    %v577 = vadd.f32 %v575, %v576
    %v578 = vrot.slane %v577, 2
    %v579 = vadd.f32 %v577, %v578
    %v580 = vrot.slane %v579, 1
    %v581 = vadd.f32 %v579, %v580
    %v582 = vsel %vm130, %v370, 0.0
    %v583 = vrot.slane %v582, 4
    %v584 = vadd.f32 %v582, %v583
    %v585 = vrot.slane %v584, 2
    %v586 = vadd.f32 %v584, %v585
    %v587 = vrot.slane %v586, 1
    %v588 = vadd.f32 %v586, %v587
    %v589 = vsel %vm130, %v371, 0.0
    %v590 = vrot.slane %v589, 4
    %v591 = vadd.f32 %v589, %v590
    %v592 = vrot.slane %v591, 2
    %v593 = vadd.f32 %v591, %v592
    %v594 = vrot.slane %v593, 1
    %v595 = vadd.f32 %v593, %v594
    %v596 = vld [vmem:[#allocation7] sm:$0xff]
    %v597 = vld [vmem:[#allocation7 + $0x8] sm:$0xff]
    %v598 = vld [vmem:[#allocation7 + $0x10] sm:$0xff]
    %v599 = vld [vmem:[#allocation7 + $0x18] sm:$0xff]
    %v600 = vld [vmem:[%s4] sm:$0x1]
    %v602 = vperm.slane %v600, 0
    %vm636 = vcmask 1041409
    %v637 = vsel %vm636, %v385, %v378
    %vm638 = vcmask 1042434
    %v639 = vsel %vm638, %v392, %v637
    %vm640 = vcmask 1043459
    %v641 = vsel %vm640, %v399, %v639
    %vm642 = vcmask 1044484
    %v643 = vsel %vm642, %v406, %v641
    %vm644 = vcmask 1045509
    %v645 = vsel %vm644, %v413, %v643
    %vm646 = vcmask 1046534
    %v647 = vsel %vm646, %v420, %v645
    %vm648 = vcmask 1047559
    %v649 = vsel %vm648, %v427, %v647
    %v650 = vsel %vm636, %v441, %v434
    %v651 = vsel %vm638, %v448, %v650
    %v652 = vsel %vm640, %v455, %v651
    %v653 = vsel %vm642, %v462, %v652
    %v654 = vsel %vm644, %v469, %v653
    %v655 = vsel %vm646, %v476, %v654
    %v656 = vsel %vm648, %v483, %v655
    %v657 = vsel %vm636, %v497, %v490
    %v658 = vsel %vm638, %v504, %v657
    %v659 = vsel %vm640, %v511, %v658
    %v660 = vsel %vm642, %v518, %v659
    %v661 = vsel %vm644, %v525, %v660
    %v662 = vsel %vm646, %v532, %v661
    %v663 = vsel %vm648, %v539, %v662
    %v664 = vsel %vm636, %v553, %v546
    %v665 = vsel %vm638, %v560, %v664
    %v666 = vsel %vm640, %v567, %v665
    %v667 = vsel %vm642, %v574, %v666
    %v668 = vsel %vm644, %v581, %v667
    %v669 = vsel %vm646, %v588, %v668
    %v670 = vsel %vm648, %v595, %v669
    %v671 = vsel %vm130, %v649, 0
    %v673 = vsel %vm130, %v656, 0
    %v675 = vsel %vm130, %v663, 0
    %v677 = vsel %vm130, %v670, 0
    %679 = vmatpush.msra.mxu0 0.0
    %680 = vmatpush.msra.mxu0 0.0
    %681 = vmatpush.msra.mxu0 0.0
    %682 = vmatpush.msra.mxu0 0.0
    %683 = vmatpush.msra.mxu0 0.0
    %684 = vmatpush.msra.mxu0 0.0
    %685 = vmatpush.msra.mxu0 0.0
    %686 = vmatpush.msra.mxu0 0.0
    %687 = vmatpush.msra.mxu0 0.0
    %688 = vmatpush.msra.mxu0 0.0
    %689 = vmatpush.msra.mxu0 0.0
    %690 = vmatpush.msra.mxu0 0.0
    %691 = vmatpush.msra.mxu0 %v599
    %692 = vmatpush.msra.mxu0 %v598
    %693 = vmatpush.msra.mxu0 %v597
    %694 = vmatpush.msra.mxu0 %v596
    %695 = vmatmul.f32.gmra.mxu0 %v671
    %v696 = vpop.f32.mrf.mxu0
    %v697 = vadd.f32 %v602, %v696
    %698 = vmatmul.f32.gmra.mxu0 %v673
    %v699 = vpop.f32.mrf.mxu0
    %v700 = vadd.f32 %v602, %v699
    %701 = vmatmul.f32.gmra.mxu0 %v675
    %v702 = vpop.f32.mrf.mxu0
    %v703 = vadd.f32 %v602, %v702
    %704 = vmatmul.f32.gmra.mxu0 %v677
    %v705 = vpop.f32.mrf.mxu0
    %v706 = vadd.f32 %v602, %v705
    %707 = vdwg.mxu0
    %v708 = vmax.f32 %v697, 0.0
    %v709 = vmax.f32 %v700, 0.0
    %v710 = vmax.f32 %v703, 0.0
    %v711 = vmax.f32 %v706, 0.0
    %v712 = vld [vmem:[#allocation8] sm:$0xff]
    %v713 = vld [vmem:[#allocation8 + $0x8] sm:$0xff]
    %v714 = vld [vmem:[#allocation8 + $0x10] sm:$0xff]
    %v715 = vld [vmem:[#allocation8 + $0x18] sm:$0xff]
    %v716 = vld [vmem:[%s6] sm:$0x1]
    %v718 = vperm.slane %v716, 0
    %v721 = vsel %vm130, %v708, 0
    %v724 = vsel %vm130, %v709, 0
    %v727 = vsel %vm130, %v710, 0
    %v730 = vsel %vm130, %v711, 0
    %732 = vmatpush.msra.mxu0 0.0
    %733 = vmatpush.msra.mxu0 0.0
    %734 = vmatpush.msra.mxu0 0.0
    %735 = vmatpush.msra.mxu0 0.0
    %736 = vmatpush.msra.mxu0 0.0
    %737 = vmatpush.msra.mxu0 0.0
    %738 = vmatpush.msra.mxu0 0.0
    %739 = vmatpush.msra.mxu0 0.0
    %740 = vmatpush.msra.mxu0 0.0
    %741 = vmatpush.msra.mxu0 0.0
    %742 = vmatpush.msra.mxu0 0.0
    %743 = vmatpush.msra.mxu0 0.0
    %744 = vmatpush.msra.mxu0 %v715
    %745 = vmatpush.msra.mxu0 %v714
    %746 = vmatpush.msra.mxu0 %v713
    %747 = vmatpush.msra.mxu0 %v712
    %748 = vmatmul.f32.gmra.mxu0 %v721
    %v749 = vpop.f32.mrf.mxu0
    %v750 = vadd.f32 %v718, %v749
    %751 = vmatmul.f32.gmra.mxu0 %v724
    %v752 = vpop.f32.mrf.mxu0
    %v753 = vadd.f32 %v718, %v752
    %754 = vmatmul.f32.gmra.mxu0 %v727
    %v755 = vpop.f32.mrf.mxu0
    %v756 = vadd.f32 %v718, %v755
    %757 = vmatmul.f32.gmra.mxu0 %v730
    %v758 = vpop.f32.mrf.mxu0
    %v759 = vadd.f32 %v718, %v758
    %760 = vdwg.mxu0
    %761 = vst [vmem:[#allocation10] sm:$0xff] %v750
    %762 = vst [vmem:[#allocation10 + $0x8] sm:$0xff] %v753
    %763 = vst [vmem:[#allocation10 + $0x10] sm:$0xff] %v756
    %764 = vst [vmem:[#allocation10 + $0x18] sm:$0xff] %v759
    // Predicated region
    $region46: #{tpu_custom_call.1} parent=1 // pred_check
      _
    $region47: #{tpu_custom_call.1} parent=1 // pred_check_branch
      %766 = sbr.rel (0) target = $region49
    $region48: #{tpu_custom_call.1} parent=1 // pred_region
      %768 = vsyncadd [#allocation4], 0
      %s769 = sshll.u32 [#allocation10], 4
      %s770 = int_to_ptr.vmem [resolvable:$true] %s769
      %s771 = sshll.u32 %s7, 4
      %s772 = int_to_ptr.hbm [resolvable:$true] %s771
      %777 = dma.vmem_to_hbm [thread:$0]  %s770, 512, %s772, [#allocation4], 128, 128, 8
    $region49: #{tpu_custom_call.1} parent=1 // pred_fallthru
      _
    // Predicated region
    $region50: #{tpu_custom_call.1} parent=1 // pred_check
      _
    $region51: #{tpu_custom_call.1} parent=1 // pred_check_branch
      %779 = sbr.rel (0) target = $region53
    $region52: #{tpu_custom_call.1} parent=1 // pred_region
      %781 = dma.done [#allocation4], 512
    $region53: #{tpu_custom_call.1} parent=1 // pred_fallthru
      _
    %782 = vsyncpa [#allocation3], 1
    %783 = vsyncpa [#allocation6], 1
    %784 = vsyncpa [#allocation9], 1
    %785 = vsyncpa [#allocation4], 1

</llo_original>
